<compile_context>
chip_gen: v5e
topology: v5e:2x2
jax: 0.10.0
libtpu: 0.0.40
codegen_flags: <defaults>
</compile_context>

<pallas_src>
import functools

import jax
import jax.numpy as jnp
from jax import lax
from jax.experimental import pallas as pl
from jax.experimental.pallas import tpu as pltpu

KERNEL_SIZE = 5  # moving-average window (must be odd -> same output length)


def _series_decomp_kernel(x_ref, res_ref, mean_ref, *, pad, step):
    """Block: (rows_block, N) with N = L*C; time axis has stride `step` (= C) on lanes."""
    x = x_ref[...].astype(jnp.float32)
    n = x.shape[-1]

    lane = lax.broadcasted_iota(jnp.int32, x.shape, dimension=1)
    head = lane < step            # first-timestep region (replicate low edge)
    tail = lane >= (n - step)     # last-timestep region (replicate high edge)

    fwd_shift = (n - step) % n    # roll left by one timestep: fwd[j] <- fwd[j + step]
    bwd_shift = step % n          # roll right by one timestep: bwd[j] <- bwd[j - step]

    fwd = x
    bwd = x
    acc = x
    for _ in range(pad):
        fwd_r = pltpu.roll(fwd, shift=fwd_shift, axis=1) if fwd_shift else fwd
        bwd_r = pltpu.roll(bwd, shift=bwd_shift, axis=1) if bwd_shift else bwd
        fwd = jnp.where(tail, fwd, fwd_r)   # clamp: last timestep replicates itself
        bwd = jnp.where(head, bwd, bwd_r)   # clamp: first timestep replicates itself
        acc = acc + fwd + bwd

    mean = acc * (1.0 / (2 * pad + 1))
    mean_ref[...] = mean.astype(mean_ref.dtype)
    res_ref[...] = (x - mean).astype(res_ref.dtype)


def _sublane_multiple(itemsize):
    # Sub-32-bit dtypes pack 2/4 rows per sublane.
    return {4: 8, 2: 16, 1: 32}.get(int(itemsize), 8)


def _pick_row_block(rows, per_row_io_bytes, per_row_ws_bytes, itemsize,
                    ws_budget=24 << 20, min_split_tile=1 << 20):
    """Largest row block (divisor of `rows`, sublane-aligned when possible) whose
    working set fits `ws_budget`.  Returns None if even the smallest block is too big."""
    mult = _sublane_multiple(itemsize)
    cands = {rows}
    if rows % mult == 0:
        cands.update(rb for rb in range(mult, rows, mult) if rows % rb == 0)
    fitting = sorted(rb for rb in cands if rb * per_row_ws_bytes <= ws_budget)
    if not fitting:
        return None
    best = fitting[-1]
    # Megacore (v7x): prefer >=4 parallel grid steps so each TensorCore still
    # double-buffers, but only if the per-step IO tile stays >= ~1 MiB (85%+ of the
    # HBM roofline).  Small arrays stay as one block (optimal on single-TC v5e/v6e).
    if rows // best < 4:
        splits = [rb for rb in fitting
                  if rows // rb >= 4 and rb * per_row_io_bytes >= min_split_tile]
        if splits:
            best = splits[-1]
    return best


def series_decomp(x, kernel_size=KERNEL_SIZE, *, use_pallas=None):
    """x: (B, L, C) -> (res, moving_mean), both (B, L, C). stride=1, odd kernel."""
    if kernel_size % 2 != 1:
        raise ValueError(
            "series_decomp requires an odd kernel_size (PyTorch AvgPool1d with "
            "stride=1 would otherwise change the sequence length).")
    B, L, C = x.shape
    pad = (kernel_size - 1) // 2
    n = L * C
    itemsize = x.dtype.itemsize

    per_row_io = n * itemsize                       # one input-tile row
    per_row_ws = 6 * per_row_io + 8 * n * 4         # dbl-buffered in+2 out + f32 temps

    if use_pallas is None:
        # Tiny inputs: the fused XLA path beats the fixed pallas_call launch cost.
        use_pallas = x.size * itemsize >= (256 << 10)

    rb = _pick_row_block(B, per_row_io, per_row_ws, itemsize) if use_pallas else None
    if rb is None:
        # TODO(synk): add an L-tiled path with a pad-wide halo for rows too long for VMEM.
        return _series_decomp_ref(x, kernel_size)

    xf = x.reshape(B, n)  # contiguous reshape: free bitcast, no HBM relayout
    vmem_limit = int(min(32 << 20, max(4 << 20, int(rb * per_row_ws * 1.3))))

    kern = functools.partial(_series_decomp_kernel, pad=pad, step=C)
    spec = pl.BlockSpec((rb, n), lambda i: (i, 0))
    res_f, mean_f = pl.pallas_call(
        kern,
        out_shape=(jax.ShapeDtypeStruct((B, n), x.dtype),
                   jax.ShapeDtypeStruct((B, n), x.dtype)),
        grid=(B // rb,),
        in_specs=[spec],
        out_specs=(spec, spec),
        compiler_params=pltpu.CompilerParams(
            dimension_semantics=("parallel",),
            vmem_limit_bytes=vmem_limit,
        ),
    )(xf)

    return res_f.reshape(B, L, C), mean_f.reshape(B, L, C)


def _series_decomp_ref(x, kernel_size=KERNEL_SIZE):
    """Pure-JAX reference matching the PyTorch forward."""
    pad = (kernel_size - 1) // 2
    xp = jnp.concatenate(
        [jnp.repeat(x[:, :1, :], pad, axis=1), x, jnp.repeat(x[:, -1:, :], pad, axis=1)],
        axis=1)
    L = x.shape[1]
    mean = sum(xp[:, i:i + L, :].astype(jnp.float32) for i in range(kernel_size))
    mean = (mean / kernel_size).astype(x.dtype)
    return x - mean, mean


if __name__ == "__main__":
    key = jax.random.PRNGKey(0)
    B, L, C = 2, 128, 8
    x = jax.random.normal(key, (B, L, C), dtype=jnp.float32)

    fn = jax.jit(functools.partial(series_decomp, kernel_size=KERNEL_SIZE,
                                   use_pallas=True))
    res, mean = fn(x)
    jax.block_until_ready((res, mean))

    res_want, mean_want = _series_decomp_ref(x, KERNEL_SIZE)
    assert res.shape == (B, L, C) and mean.shape == (B, L, C)
    assert jnp.allclose(mean, mean_want, atol=1e-5, rtol=1e-5)
    assert jnp.allclose(res, res_want, atol=1e-5, rtol=1e-5)

    print("KERNEL_OK")
</pallas_src>

<mosaic_0001>
module attributes {stable_mosaic.version = 11 : i64} {
  func.func @_series_decomp_kernel(%arg0: i32, %arg1: memref<2x1024xf32, #tpu.memory_space<vmem>>, %arg2: memref<2x1024xf32, #tpu.memory_space<vmem>>, %arg3: memref<2x1024xf32, #tpu.memory_space<vmem>>) attributes {dimension_semantics = [#tpu.dimension_semantics<parallel>], iteration_bounds = array<i64: 1>, scalar_prefetch = 0 : i64, scratch_operands = 0 : i64, tpu.core_type = #tpu.core_type<tc>, window_params = [{transform_indices = @transform_0, window_bounds = array<i64: 2, 1024>}, {transform_indices = @transform_1, window_bounds = array<i64: 2, 1024>}, {transform_indices = @transform_2, window_bounds = array<i64: 2, 1024>}]} {
    %c0 = arith.constant 0 : index
    %c0_0 = arith.constant 0 : index
    %0 = vector.load %arg1[%c0, %c0_0] : memref<2x1024xf32, #tpu.memory_space<vmem>>, vector<2x1024xf32>
    %1 = tpu.iota {dimensions = array<i32: 1>} : vector<2x1024xi32>
    %c8_i32 = arith.constant 8 : i32
    %2 = vector.broadcast %c8_i32 : i32 to vector<2x1024xi32>
    %3 = arith.cmpi slt, %1, %2 : vector<2x1024xi32>
    %c1016_i32 = arith.constant 1016 : i32
    %4 = vector.broadcast %c1016_i32 : i32 to vector<2x1024xi32>
    %5 = arith.cmpi sge, %1, %4 : vector<2x1024xi32>
    %c1016_i32_1 = arith.constant 1016 : i32
    %6 = tpu.dynamic_rotate %0 by %c1016_i32_1 dim 1 : vector<2x1024xf32>, i32 -> vector<2x1024xf32>
    %c8_i32_2 = arith.constant 8 : i32
    %7 = tpu.dynamic_rotate %0 by %c8_i32_2 dim 1 : vector<2x1024xf32>, i32 -> vector<2x1024xf32>
    %8 = arith.select %5, %0, %6 : vector<2x1024xi1>, vector<2x1024xf32>
    %9 = arith.select %3, %0, %7 : vector<2x1024xi1>, vector<2x1024xf32>
    %10 = arith.addf %0, %8 : vector<2x1024xf32>
    %11 = arith.addf %10, %9 : vector<2x1024xf32>
    %c1016_i32_3 = arith.constant 1016 : i32
    %12 = tpu.dynamic_rotate %8 by %c1016_i32_3 dim 1 : vector<2x1024xf32>, i32 -> vector<2x1024xf32>
    %c8_i32_4 = arith.constant 8 : i32
    %13 = tpu.dynamic_rotate %9 by %c8_i32_4 dim 1 : vector<2x1024xf32>, i32 -> vector<2x1024xf32>
    %14 = arith.select %5, %8, %12 : vector<2x1024xi1>, vector<2x1024xf32>
    %15 = arith.select %3, %9, %13 : vector<2x1024xi1>, vector<2x1024xf32>
    %16 = arith.addf %11, %14 : vector<2x1024xf32>
    %17 = arith.addf %16, %15 : vector<2x1024xf32>
    %cst = arith.constant 2.000000e-01 : f32
    %18 = vector.broadcast %cst : f32 to vector<2x1024xf32>
    %19 = arith.mulf %17, %18 : vector<2x1024xf32>
    %c0_5 = arith.constant 0 : index
    %c0_6 = arith.constant 0 : index
    %20 = vector.load %arg3[%c0_5, %c0_6] : memref<2x1024xf32, #tpu.memory_space<vmem>>, vector<2x1024xf32>
    tpu.vector_store %arg3[%c0_5, %c0_6], %19 {strides = array<i32>} : memref<2x1024xf32, #tpu.memory_space<vmem>>, vector<2x1024xf32>,
    %21 = arith.subf %0, %19 : vector<2x1024xf32>
    %c0_7 = arith.constant 0 : index
    %c0_8 = arith.constant 0 : index
    %22 = vector.load %arg2[%c0_7, %c0_8] : memref<2x1024xf32, #tpu.memory_space<vmem>>, vector<2x1024xf32>
    tpu.vector_store %arg2[%c0_7, %c0_8], %21 {strides = array<i32>} : memref<2x1024xf32, #tpu.memory_space<vmem>>, vector<2x1024xf32>,
    return
  }
  func.func @transform_0(%arg0: i32) -> (i32, i32) {
    %c0_i32 = arith.constant 0 : i32
    %c0_i32_0 = arith.constant 0 : i32
    return %arg0, %c0_i32 : i32, i32
  }
  func.func @transform_1(%arg0: i32) -> (i32, i32) {
    %c0_i32 = arith.constant 0 : i32
    %c0_i32_0 = arith.constant 0 : i32
    return %arg0, %c0_i32 : i32, i32
  }
  func.func @transform_2(%arg0: i32) -> (i32, i32) {
    %c0_i32 = arith.constant 0 : i32
    %c0_i32_0 = arith.constant 0 : i32
    return %arg0, %c0_i32 : i32, i32
  }
}

</mosaic_0001>

<llo_original>
// kernel: series_decomp.1
$region0: #{series_decomp.1}
  #allocation0 [shape = 'u32[]', space=smem, size = 0x4, offset = 0x4, fixed_abs, tag = 'smem constant byte address 0x4 - core index']
  #allocation1 [shape = 'u32[72,128]{1,0:T(1,128)}', space=vmem, size = 0x9000, scoped, tag = 'internal scratch']
  %s0 = inlined_call_operand.vmem [shape: f32[2,1024], index: 0, kind: input, shape index: {}]
  %s1 = inlined_call_operand.vmem [shape: f32[2,1024], index: 1, kind: output, shape index: {0}]
  %s2 = inlined_call_operand.vmem [shape: f32[2,1024], index: 2, kind: output, shape index: {1}]
  %3 = xla_tuple %s1, %s2
  %s4 = sld [smem:[#allocation0]]
  $region22: #{series_decomp.1} parent=0
    _
  %s6 = ssub.s32 1, %s4
  %s7 = scalar_select 0, %s6, %s4
  // Predicated region
  $region2: #{series_decomp.1} parent=0 // pred_check
    _
  $region3: #{series_decomp.1} parent=0 // pred_check_branch
    %9 = sbr.rel (0) target = $region5
  $region4: #{series_decomp.1} parent=0 // pred_region
    _
  $region5: #{series_decomp.1} parent=0 // pred_fallthru
    _
  %v10 = vld [vmem:[%s0] sm:$0xff]
  %v11 = vld [vmem:[%s0 + $0x8] sm:$0xff]
  %v12 = vlaneseq
  %v13 = vand.u32 %v12, 127
  %v14 = vadd.s32 %v13, 128
  %v15 = vadd.s32 %v13, 256
  %v16 = vadd.s32 %v13, 384
  %v17 = vadd.s32 %v13, 512
  %v18 = vadd.s32 %v13, 640
  %v19 = vadd.s32 %v13, 768
  %v20 = vadd.s32 %v13, 896
  %vm21 = vcmp.lt.s32.totalorder %v13, 8
  %vm22 = vcmp.lt.s32.totalorder %v14, 8
  %vm23 = vcmp.lt.s32.totalorder %v15, 8
  %vm24 = vcmp.lt.s32.totalorder %v16, 8
  %vm25 = vcmp.lt.s32.totalorder %v17, 8
  %vm26 = vcmp.lt.s32.totalorder %v18, 8
  %vm27 = vcmp.lt.s32.totalorder %v19, 8
  %vm28 = vcmp.lt.s32.totalorder %v20, 8
  %vm29 = vcmp.ge.s32.totalorder %v13, 1016
  %vm30 = vcmp.ge.s32.totalorder %v14, 1016
  %vm31 = vcmp.ge.s32.totalorder %v15, 1016
  %vm32 = vcmp.ge.s32.totalorder %v16, 1016
  %vm33 = vcmp.ge.s32.totalorder %v17, 1016
  %vm34 = vcmp.ge.s32.totalorder %v18, 1016
  %vm35 = vcmp.ge.s32.totalorder %v19, 1016
  %vm36 = vcmp.ge.s32.totalorder %v20, 1016
  %39 = vst [vmem:[#allocation1] ss:$4 sm:$0xff] %v10
  %s40 = scalar_lea.vmem [#allocation1], 32
  %41 = vst [vmem:[%s40] ss:$4 sm:$0xff] %v11
  %v42 = vld.sshfl [vmem:[#allocation1] sm:$0xff pattern:$0x73625140]
  %v43 = vld.sshfl [vmem:[#allocation1 + $0x8] sm:$0xff pattern:$0x73625140]
  %v44 = vld.sshfl [vmem:[#allocation1 + $0x10] sm:$0xff pattern:$0x73625140]
  %v45 = vld.sshfl [vmem:[#allocation1 + $0x18] sm:$0xff pattern:$0x73625140]
  %v46 = vld.sshfl [vmem:[#allocation1 + $0x20] sm:$0xff pattern:$0x73625140]
  %v47 = vld.sshfl [vmem:[#allocation1 + $0x28] sm:$0xff pattern:$0x73625140]
  %v48 = vld.sshfl [vmem:[#allocation1 + $0x30] sm:$0xff pattern:$0x73625140]
  %v49 = vld.sshfl [vmem:[#allocation1 + $0x38] sm:$0xff pattern:$0x73625140]
  %58 = vrot.lane.b32.xlu0 %v42, 120
  %v59 = vpop.permute.xlu0 %58
  %60 = vrot.lane.b32.xlu0 %v43, 120
  %v61 = vpop.permute.xlu0 %60
  %62 = vrot.lane.b32.xlu0 %v44, 120
  %v63 = vpop.permute.xlu0 %62
  %64 = vrot.lane.b32.xlu0 %v45, 120
  %v65 = vpop.permute.xlu0 %64
  %66 = vrot.lane.b32.xlu0 %v46, 120
  %v67 = vpop.permute.xlu0 %66
  %68 = vrot.lane.b32.xlu0 %v47, 120
  %v69 = vpop.permute.xlu0 %68
  %70 = vrot.lane.b32.xlu0 %v48, 120
  %v71 = vpop.permute.xlu0 %70
  %72 = vrot.lane.b32.xlu0 %v49, 120
  %v73 = vpop.permute.xlu0 %72
  %vm74 = vcmp.lt.s32.totalorder %v13, 120
  %v75 = vsel %vm74, %v71, %v73
  %v76 = vsel %vm74, %v69, %v71
  %v77 = vsel %vm74, %v67, %v69
  %v78 = vsel %vm74, %v65, %v67
  %v79 = vsel %vm74, %v63, %v65
  %v80 = vsel %vm74, %v61, %v63
  %v81 = vsel %vm74, %v59, %v61
  %v82 = vsel %vm74, %v73, %v59
  %83 = vst [vmem:[#allocation1] ss:$4 sm:$0xff] %v10
  %s84 = scalar_lea.vmem [#allocation1], 32
  %85 = vst [vmem:[%s84] ss:$4 sm:$0xff] %v11
  %v86 = vld.sshfl [vmem:[#allocation1] sm:$0xff pattern:$0x73625140]
  %v87 = vld.sshfl [vmem:[#allocation1 + $0x8] sm:$0xff pattern:$0x73625140]
  %v88 = vld.sshfl [vmem:[#allocation1 + $0x10] sm:$0xff pattern:$0x73625140]
  %v89 = vld.sshfl [vmem:[#allocation1 + $0x18] sm:$0xff pattern:$0x73625140]
  %v90 = vld.sshfl [vmem:[#allocation1 + $0x20] sm:$0xff pattern:$0x73625140]
  %v91 = vld.sshfl [vmem:[#allocation1 + $0x28] sm:$0xff pattern:$0x73625140]
  %v92 = vld.sshfl [vmem:[#allocation1 + $0x30] sm:$0xff pattern:$0x73625140]
  %v93 = vld.sshfl [vmem:[#allocation1 + $0x38] sm:$0xff pattern:$0x73625140]
  %102 = vrot.lane.b32.xlu0 %v86, 8
  %v103 = vpop.permute.xlu0 %102
  %104 = vrot.lane.b32.xlu0 %v87, 8
  %v105 = vpop.permute.xlu0 %104
  %106 = vrot.lane.b32.xlu0 %v88, 8
  %v107 = vpop.permute.xlu0 %106
  %108 = vrot.lane.b32.xlu0 %v89, 8
  %v109 = vpop.permute.xlu0 %108
  %110 = vrot.lane.b32.xlu0 %v90, 8
  %v111 = vpop.permute.xlu0 %110
  %112 = vrot.lane.b32.xlu0 %v91, 8
  %v113 = vpop.permute.xlu0 %112
  %114 = vrot.lane.b32.xlu0 %v92, 8
  %v115 = vpop.permute.xlu0 %114
  %116 = vrot.lane.b32.xlu0 %v93, 8
  %v117 = vpop.permute.xlu0 %116
  %v118 = vsel %vm21, %v115, %v117
  %v119 = vsel %vm21, %v113, %v115
  %v120 = vsel %vm21, %v111, %v113
  %v121 = vsel %vm21, %v109, %v111
  %v122 = vsel %vm21, %v107, %v109
  %v123 = vsel %vm21, %v105, %v107
  %v124 = vsel %vm21, %v103, %v105
  %v125 = vsel %vm21, %v117, %v103
  %126 = vst [vmem:[#allocation1] ss:$4 sm:$0xff] %v10
  %s127 = scalar_lea.vmem [#allocation1], 32
  %128 = vst [vmem:[%s127] ss:$4 sm:$0xff] %v11
  %v129 = vld.sshfl [vmem:[#allocation1] sm:$0xff pattern:$0x73625140]
  %v130 = vld.sshfl [vmem:[#allocation1 + $0x8] sm:$0xff pattern:$0x73625140]
  %v131 = vld.sshfl [vmem:[#allocation1 + $0x10] sm:$0xff pattern:$0x73625140]
  %v132 = vld.sshfl [vmem:[#allocation1 + $0x18] sm:$0xff pattern:$0x73625140]
  %v133 = vld.sshfl [vmem:[#allocation1 + $0x20] sm:$0xff pattern:$0x73625140]
  %v134 = vld.sshfl [vmem:[#allocation1 + $0x28] sm:$0xff pattern:$0x73625140]
  %v135 = vld.sshfl [vmem:[#allocation1 + $0x30] sm:$0xff pattern:$0x73625140]
  %v136 = vld.sshfl [vmem:[#allocation1 + $0x38] sm:$0xff pattern:$0x73625140]
  %v145 = vsel %vm29, %v129, %v81
  %v146 = vsel %vm30, %v130, %v80
  %v147 = vsel %vm31, %v131, %v79
  %v148 = vsel %vm32, %v132, %v78
  %v149 = vsel %vm33, %v133, %v77
  %v150 = vsel %vm34, %v134, %v76
  %v151 = vsel %vm35, %v135, %v75
  %v152 = vsel %vm36, %v136, %v82
  %153 = vst [vmem:[#allocation1] ss:$4 sm:$0xff] %v10
  %s154 = scalar_lea.vmem [#allocation1], 32
  %155 = vst [vmem:[%s154] ss:$4 sm:$0xff] %v11
  %v156 = vld.sshfl [vmem:[#allocation1] sm:$0xff pattern:$0x73625140]
  %v157 = vld.sshfl [vmem:[#allocation1 + $0x8] sm:$0xff pattern:$0x73625140]
  %v158 = vld.sshfl [vmem:[#allocation1 + $0x10] sm:$0xff pattern:$0x73625140]
  %v159 = vld.sshfl [vmem:[#allocation1 + $0x18] sm:$0xff pattern:$0x73625140]
  %v160 = vld.sshfl [vmem:[#allocation1 + $0x20] sm:$0xff pattern:$0x73625140]
  %v161 = vld.sshfl [vmem:[#allocation1 + $0x28] sm:$0xff pattern:$0x73625140]
  %v162 = vld.sshfl [vmem:[#allocation1 + $0x30] sm:$0xff pattern:$0x73625140]
  %v163 = vld.sshfl [vmem:[#allocation1 + $0x38] sm:$0xff pattern:$0x73625140]
  %v172 = vsel %vm21, %v156, %v125
  %v173 = vsel %vm22, %v157, %v124
  %v174 = vsel %vm23, %v158, %v123
  %v175 = vsel %vm24, %v159, %v122
  %v176 = vsel %vm25, %v160, %v121
  %v177 = vsel %vm26, %v161, %v120
  %v178 = vsel %vm27, %v162, %v119
  %v179 = vsel %vm28, %v163, %v118
  %v188 = vrot.slane %v146, 6
  %v189 = vrot.slane %v147, 4
  %v190 = vrot.slane %v148, 2
  %v191 = vrot.slane %v150, 6
  %v192 = vrot.slane %v151, 4
  %v193 = vrot.slane %v152, 2
  %vm194 = vcmask 1041408
  %v195 = vsel %vm194, %v145, %v188
  %vm196 = vcmask 1045508
  %v197 = vsel %vm196, %v189, %v190
  %vm198 = vcmask 1043456
  %v199 = vsel %vm198, %v195, %v197
  %v200 = vsel %vm194, %v149, %v191
  %v201 = vsel %vm196, %v192, %v193
  %v202 = vsel %vm198, %v200, %v201
  %v205 = vadd.f32 %v10, %v199
  %v206 = vadd.f32 %v11, %v202
  %v215 = vrot.slane %v173, 6
  %v216 = vrot.slane %v174, 4
  %v217 = vrot.slane %v175, 2
  %v218 = vrot.slane %v177, 6
  %v219 = vrot.slane %v178, 4
  %v220 = vrot.slane %v179, 2
  %v221 = vsel %vm194, %v172, %v215
  %v222 = vsel %vm196, %v216, %v217
  %v223 = vsel %vm198, %v221, %v222
  %v224 = vsel %vm194, %v176, %v218
  %v225 = vsel %vm196, %v219, %v220
  %v226 = vsel %vm198, %v224, %v225
  %v229 = vadd.f32 %v205, %v223
  %v230 = vadd.f32 %v206, %v226
  %231 = vrot.lane.b32.xlu0 %v145, 120
  %v232 = vpop.permute.xlu0 %231
  %233 = vrot.lane.b32.xlu0 %v146, 120
  %v234 = vpop.permute.xlu0 %233
  %235 = vrot.lane.b32.xlu0 %v147, 120
  %v236 = vpop.permute.xlu0 %235
  %237 = vrot.lane.b32.xlu0 %v148, 120
  %v238 = vpop.permute.xlu0 %237
  %239 = vrot.lane.b32.xlu0 %v149, 120
  %v240 = vpop.permute.xlu0 %239
  %241 = vrot.lane.b32.xlu0 %v150, 120
  %v242 = vpop.permute.xlu0 %241
  %243 = vrot.lane.b32.xlu0 %v151, 120
  %v244 = vpop.permute.xlu0 %243
  %245 = vrot.lane.b32.xlu0 %v152, 120
  %v246 = vpop.permute.xlu0 %245
  %v247 = vsel %vm74, %v244, %v246
  %v248 = vsel %vm74, %v242, %v244
  %v249 = vsel %vm74, %v240, %v242
  %v250 = vsel %vm74, %v238, %v240
  %v251 = vsel %vm74, %v236, %v238
  %v252 = vsel %vm74, %v234, %v236
  %v253 = vsel %vm74, %v232, %v234
  %v254 = vsel %vm74, %v246, %v232
  %255 = vrot.lane.b32.xlu0 %v172, 8
  %v256 = vpop.permute.xlu0 %255
  %257 = vrot.lane.b32.xlu0 %v173, 8
  %v258 = vpop.permute.xlu0 %257
  %259 = vrot.lane.b32.xlu0 %v174, 8
  %v260 = vpop.permute.xlu0 %259
  %261 = vrot.lane.b32.xlu0 %v175, 8
  %v262 = vpop.permute.xlu0 %261
  %263 = vrot.lane.b32.xlu0 %v176, 8
  %v264 = vpop.permute.xlu0 %263
  %265 = vrot.lane.b32.xlu0 %v177, 8
  %v266 = vpop.permute.xlu0 %265
  %267 = vrot.lane.b32.xlu0 %v178, 8
  %v268 = vpop.permute.xlu0 %267
  %269 = vrot.lane.b32.xlu0 %v179, 8
  %v270 = vpop.permute.xlu0 %269
  %v271 = vsel %vm21, %v268, %v270
  %v272 = vsel %vm21, %v266, %v268
  %v273 = vsel %vm21, %v264, %v266
  %v274 = vsel %vm21, %v262, %v264
  %v275 = vsel %vm21, %v260, %v262
  %v276 = vsel %vm21, %v258, %v260
  %v277 = vsel %vm21, %v256, %v258
  %v278 = vsel %vm21, %v270, %v256
  %279 = vst [vmem:[#allocation1] ss:$4 sm:$0xff] %v10
  %s280 = scalar_lea.vmem [#allocation1], 32
  %281 = vst [vmem:[%s280] ss:$4 sm:$0xff] %v11
  %v282 = vld.sshfl [vmem:[#allocation1] sm:$0xff pattern:$0x73625140]
  %v283 = vld.sshfl [vmem:[#allocation1 + $0x8] sm:$0xff pattern:$0x73625140]
  %v284 = vld.sshfl [vmem:[#allocation1 + $0x10] sm:$0xff pattern:$0x73625140]
  %v285 = vld.sshfl [vmem:[#allocation1 + $0x18] sm:$0xff pattern:$0x73625140]
  %v286 = vld.sshfl [vmem:[#allocation1 + $0x20] sm:$0xff pattern:$0x73625140]
  %v287 = vld.sshfl [vmem:[#allocation1 + $0x28] sm:$0xff pattern:$0x73625140]
  %v288 = vld.sshfl [vmem:[#allocation1 + $0x30] sm:$0xff pattern:$0x73625140]
  %v289 = vld.sshfl [vmem:[#allocation1 + $0x38] sm:$0xff pattern:$0x73625140]
  %v298 = vsel %vm29, %v282, %v253
  %v299 = vsel %vm30, %v283, %v252
  %v300 = vsel %vm31, %v284, %v251
  %v301 = vsel %vm32, %v285, %v250
  %v302 = vsel %vm33, %v286, %v249
  %v303 = vsel %vm34, %v287, %v248
  %v304 = vsel %vm35, %v288, %v247
  %v305 = vsel %vm36, %v289, %v254
  %306 = vst [vmem:[#allocation1] ss:$4 sm:$0xff] %v10
  %s307 = scalar_lea.vmem [#allocation1], 32
  %308 = vst [vmem:[%s307] ss:$4 sm:$0xff] %v11
  %v309 = vld.sshfl [vmem:[#allocation1] sm:$0xff pattern:$0x73625140]
  %v310 = vld.sshfl [vmem:[#allocation1 + $0x8] sm:$0xff pattern:$0x73625140]
  %v311 = vld.sshfl [vmem:[#allocation1 + $0x10] sm:$0xff pattern:$0x73625140]
  %v312 = vld.sshfl [vmem:[#allocation1 + $0x18] sm:$0xff pattern:$0x73625140]
  %v313 = vld.sshfl [vmem:[#allocation1 + $0x20] sm:$0xff pattern:$0x73625140]
  %v314 = vld.sshfl [vmem:[#allocation1 + $0x28] sm:$0xff pattern:$0x73625140]
  %v315 = vld.sshfl [vmem:[#allocation1 + $0x30] sm:$0xff pattern:$0x73625140]
  %v316 = vld.sshfl [vmem:[#allocation1 + $0x38] sm:$0xff pattern:$0x73625140]
  %v325 = vsel %vm21, %v309, %v278
  %v326 = vsel %vm22, %v310, %v277
  %v327 = vsel %vm23, %v311, %v276
  %v328 = vsel %vm24, %v312, %v275
  %v329 = vsel %vm25, %v313, %v274
  %v330 = vsel %vm26, %v314, %v273
  %v331 = vsel %vm27, %v315, %v272
  %v332 = vsel %vm28, %v316, %v271
  %v341 = vrot.slane %v299, 6
  %v342 = vrot.slane %v300, 4
  %v343 = vrot.slane %v301, 2
  %v344 = vrot.slane %v303, 6
  %v345 = vrot.slane %v304, 4
  %v346 = vrot.slane %v305, 2
  %v347 = vsel %vm194, %v298, %v341
  %v348 = vsel %vm196, %v342, %v343
  %v349 = vsel %vm198, %v347, %v348
  %v350 = vsel %vm194, %v302, %v344
  %v351 = vsel %vm196, %v345, %v346
  %v352 = vsel %vm198, %v350, %v351
  %v355 = vadd.f32 %v229, %v349
  %v356 = vadd.f32 %v230, %v352
  %v365 = vrot.slane %v326, 6
  %v366 = vrot.slane %v327, 4
  %v367 = vrot.slane %v328, 2
  %v368 = vrot.slane %v330, 6
  %v369 = vrot.slane %v331, 4
  %v370 = vrot.slane %v332, 2
  %v371 = vsel %vm194, %v325, %v365
  %v372 = vsel %vm196, %v366, %v367
  %v373 = vsel %vm198, %v371, %v372
  %v374 = vsel %vm194, %v329, %v368
  %v375 = vsel %vm196, %v369, %v370
  %v376 = vsel %vm198, %v374, %v375
  %v379 = vadd.f32 %v355, %v373
  %v380 = vadd.f32 %v356, %v376
  %v381 = vmul.f32 %v379, 0.2
  %v382 = vmul.f32 %v380, 0.2
  %383 = vst [vmem:[%s2] sm:$0xff] %v381
  %384 = vst [vmem:[%s2 + $0x8] sm:$0xff] %v382
  %v385 = vsub.f32 %v10, %v381
  %v386 = vsub.f32 %v11, %v382
  %387 = vst [vmem:[%s1] sm:$0xff] %v385
  %388 = vst [vmem:[%s1 + $0x8] sm:$0xff] %v386
  // Predicated region
  $region6: #{series_decomp.1} parent=0 // pred_check
    _
  $region7: #{series_decomp.1} parent=0 // pred_check_branch
    %390 = sbr.rel (0) target = $region9
  $region8: #{series_decomp.1} parent=0 // pred_region
    _
  $region9: #{series_decomp.1} parent=0 // pred_fallthru
    _
  // Predicated region
  $region10: #{series_decomp.1} parent=0 // pred_check
    _
  $region11: #{series_decomp.1} parent=0 // pred_check_branch
    %392 = sbr.rel (0) target = $region13
  $region12: #{series_decomp.1} parent=0 // pred_region
    _
  $region13: #{series_decomp.1} parent=0 // pred_fallthru
    _
  // Predicated region
  $region14: #{series_decomp.1} parent=0 // pred_check
    _
  $region15: #{series_decomp.1} parent=0 // pred_check_branch
    %394 = sbr.rel (0) target = $region17
  $region16: #{series_decomp.1} parent=0 // pred_region
    _
  $region17: #{series_decomp.1} parent=0 // pred_fallthru
    _
  // Predicated region
  $region18: #{series_decomp.1} parent=0 // pred_check
    _
  $region19: #{series_decomp.1} parent=0 // pred_check_branch
    %396 = sbr.rel (0) target = $region21
  $region20: #{series_decomp.1} parent=0 // pred_region
    _
  $region21: #{series_decomp.1} parent=0 // pred_fallthru
    _

</llo_original>
